<compile_context>
chip_gen: v6e
topology: v6e:2x2x1
jax: 0.10.0
libtpu: 0.0.40
codegen_flags: <defaults>
</compile_context>

<pallas_src>
import functools

import jax
import jax.numpy as jnp
from jax.experimental import pallas as pl
from jax.experimental.pallas import tpu as pltpu


def gaussian_kernel(x_ref, w_ref, b_ref, noise_ref, out_ref, *, z_dim):
    # One fused matmul for both heads: [TB, in_dim] @ [in_dim, 2*z_dim].
    heads = jnp.dot(x_ref[...], w_ref[...],
                    preferred_element_type=jnp.float32) + b_ref[...]
    # Clamp both heads in one pass (equivalent to PyTorch's conditional clamp).
    heads = jnp.clip(heads, -100.0, 85.0)

    mu = heads[:, :z_dim]
    logvar = heads[:, z_dim:]

    # Reparameterize: z = mu + noise * exp(0.5 * logvar)  (exp runs on the EUP).
    std = jnp.exp(0.5 * logvar)
    z = mu + noise_ref[...] * std

    # Single lane-dense packed store: [TB, 3*z_dim] = mu | logvar | z.
    out_ref[...] = jnp.concatenate([mu, logvar, z], axis=-1).astype(out_ref.dtype)


def gaussian_forward(x, w_mu, b_mu, w_var, b_var, noise, *, max_tb=1024):
    """x: [B, in_dim]; w_*: [in_dim, z_dim] (transpose of torch Linear);
    b_*: [1, z_dim]; noise: [B, z_dim]. Returns (mu, logvar, z), each [B, z_dim] f32."""
    B, in_dim = x.shape
    z_dim = w_mu.shape[1]

    # Fuse the two heads wrapper-side (one-time concat, amortized under jit).
    w = jnp.concatenate([w_mu, w_var], axis=1)   # [in_dim, 2*z_dim]
    b = jnp.concatenate([b_mu, b_var], axis=1)   # [1, 2*z_dim]

    # Batch tile: full batch when small, otherwise a multiple of 8 (sublane rule).
    if B <= max_tb:
        TB = B
    else:
        TB = max(8, (max_tb // 8) * 8)
    grid = (pl.cdiv(B, TB),)

    # VMEM budget: 2x-buffered x/noise/out tiles + resident fused weight/bias,
    # with generous headroom; stays well inside every chip's scoped limit.
    tile_bytes = 4 * TB * (in_dim + z_dim + 3 * z_dim) * 2
    weight_bytes = 4 * (in_dim * 2 * z_dim + 2 * z_dim) * 2
    vmem_limit = int(min(max(4 * (tile_bytes + weight_bytes), 32 * 1024 * 1024),
                         48 * 1024 * 1024))

    cost = pl.CostEstimate(
        flops=2 * B * in_dim * (2 * z_dim) + 6 * B * z_dim,
        transcendentals=B * z_dim,
        bytes_accessed=4 * (B * in_dim          # x
                            + in_dim * 2 * z_dim + 2 * z_dim  # fused W, b
                            + B * z_dim         # noise
                            + 3 * B * z_dim),   # packed output
    )

    packed = pl.pallas_call(
        functools.partial(gaussian_kernel, z_dim=z_dim),
        out_shape=jax.ShapeDtypeStruct((B, 3 * z_dim), jnp.float32),
        grid=grid,
        in_specs=[
            pl.BlockSpec((TB, in_dim), lambda i: (i, 0)),          # x (tiled)
            pl.BlockSpec((in_dim, 2 * z_dim), lambda i: (0, 0)),   # fused W (resident)
            pl.BlockSpec((1, 2 * z_dim), lambda i: (0, 0)),        # fused b (resident)
            pl.BlockSpec((TB, z_dim), lambda i: (i, 0)),           # noise (tiled)
        ],
        out_specs=pl.BlockSpec((TB, 3 * z_dim), lambda i: (i, 0)),  # packed mu|logvar|z
        compiler_params=pltpu.CompilerParams(
            dimension_semantics=("parallel",),
            vmem_limit_bytes=vmem_limit,
        ),
        cost_estimate=cost,
    )(x, w, b, noise)

    mu = packed[:, :z_dim]
    logvar = packed[:, z_dim:2 * z_dim]
    z = packed[:, 2 * z_dim:]
    return mu, logvar, z


if __name__ == "__main__":
    # Small shapes consistent with the module: batch=8, in_dim=32, z_dim=16.
    B, in_dim, z_dim = 8, 32, 16

    key = jax.random.PRNGKey(0)
    k_x, k_wmu, k_bmu, k_wvar, k_bvar, k_noise = jax.random.split(key, 6)

    # Deterministic init mimicking nn.Linear's U(-1/sqrt(in_dim), 1/sqrt(in_dim)).
    bound = 1.0 / (in_dim ** 0.5)
    x = jax.random.normal(k_x, (B, in_dim), dtype=jnp.float32)
    w_mu = jax.random.uniform(k_wmu, (in_dim, z_dim), jnp.float32, -bound, bound)
    b_mu = jax.random.uniform(k_bmu, (1, z_dim), jnp.float32, -bound, bound)
    w_var = jax.random.uniform(k_wvar, (in_dim, z_dim), jnp.float32, -bound, bound)
    b_var = jax.random.uniform(k_bvar, (1, z_dim), jnp.float32, -bound, bound)
    noise = jax.random.normal(k_noise, (B, z_dim), dtype=jnp.float32)

    mu, logvar, z = gaussian_forward(x, w_mu, b_mu, w_var, b_var, noise)
    jax.block_until_ready((mu, logvar, z))

    # Reference check in plain JAX.
    mu_ref = jnp.clip(x @ w_mu + b_mu, -100.0, 85.0)
    lv_ref = jnp.clip(x @ w_var + b_var, -100.0, 85.0)
    z_ref = mu_ref + noise * jnp.exp(0.5 * lv_ref)
    assert jnp.allclose(mu, mu_ref, atol=1e-5)
    assert jnp.allclose(logvar, lv_ref, atol=1e-5)
    assert jnp.allclose(z, z_ref, atol=1e-5)

    print("KERNEL_OK")
</pallas_src>

<mosaic_0001>
module attributes {stable_mosaic.version = 11 : i64} {
  func.func @gaussian_kernel(%arg0: i32, %arg1: memref<8x32xf32, #tpu.memory_space<vmem>>, %arg2: memref<32x32xf32, #tpu.memory_space<vmem>>, %arg3: memref<1x32xf32, #tpu.memory_space<vmem>>, %arg4: memref<8x16xf32, #tpu.memory_space<vmem>>, %arg5: memref<8x48xf32, #tpu.memory_space<vmem>>) attributes {dimension_semantics = [#tpu.dimension_semantics<parallel>], iteration_bounds = array<i64: 1>, scalar_prefetch = 0 : i64, scratch_operands = 0 : i64, tpu.core_type = #tpu.core_type<tc>, window_params = [{transform_indices = @transform_0, window_bounds = array<i64: 8, 32>}, {pipeline_mode = #tpu.pipeline_mode<synchronous>, transform_indices = @transform_1, window_bounds = array<i64: 32, 32>}, {pipeline_mode = #tpu.pipeline_mode<synchronous>, transform_indices = @transform_2, window_bounds = array<i64: 1, 32>}, {transform_indices = @transform_3, window_bounds = array<i64: 8, 16>}, {transform_indices = @transform_4, window_bounds = array<i64: 8, 48>}]} {
    %c0 = arith.constant 0 : index
    %c0_0 = arith.constant 0 : index
    %0 = vector.load %arg1[%c0, %c0_0] : memref<8x32xf32, #tpu.memory_space<vmem>>, vector<8x32xf32>
    %c0_1 = arith.constant 0 : index
    %c0_2 = arith.constant 0 : index
    %1 = vector.load %arg2[%c0_1, %c0_2] : memref<32x32xf32, #tpu.memory_space<vmem>>, vector<32x32xf32>
    %cst = arith.constant dense<0.000000e+00> : vector<8x32xf32>
    %2 = tpu.matmul %0, %1, %cst {dimension_numbers = #tpu.dot_dimension_numbers<[1], [0], [0], [1], [0, 0, 1, 1], [], []>} : vector<8x32xf32>, vector<32x32xf32>, vector<8x32xf32> -> vector<8x32xf32>
    %c0_3 = arith.constant 0 : index
    %c0_4 = arith.constant 0 : index
    %3 = vector.load %arg3[%c0_3, %c0_4] : memref<1x32xf32, #tpu.memory_space<vmem>>, vector<1x32xf32>
    %4 = vector.broadcast %3 : vector<1x32xf32> to vector<8x32xf32>
    %5 = arith.addf %2, %4 : vector<8x32xf32>
    %cst_5 = arith.constant -1.000000e+02 : f32
    %cst_6 = arith.constant 8.500000e+01 : f32
    %6 = vector.broadcast %cst_5 : f32 to vector<8x32xf32>
    %7 = arith.maximumf %6, %5 : vector<8x32xf32>
    %8 = vector.broadcast %cst_6 : f32 to vector<8x32xf32>
    %9 = arith.minimumf %8, %7 : vector<8x32xf32>
    %10 = vector.extract_strided_slice %9 {offsets = [0, 0], sizes = [8, 16], strides = [1, 1]} : vector<8x32xf32> to vector<8x16xf32>
    %11 = vector.extract_strided_slice %9 {offsets = [0, 16], sizes = [8, 16], strides = [1, 1]} : vector<8x32xf32> to vector<8x16xf32>
    %cst_7 = arith.constant 5.000000e-01 : f32
    %12 = vector.broadcast %cst_7 : f32 to vector<8x16xf32>
    %13 = arith.mulf %12, %11 : vector<8x16xf32>
    %14 = math.exp %13 : vector<8x16xf32>
    %c0_8 = arith.constant 0 : index
    %c0_9 = arith.constant 0 : index
    %15 = vector.load %arg4[%c0_8, %c0_9] : memref<8x16xf32, #tpu.memory_space<vmem>>, vector<8x16xf32>
    %16 = arith.mulf %15, %14 : vector<8x16xf32>
    %17 = arith.addf %10, %16 : vector<8x16xf32>
    %18 = tpu.concatenate %10, %11, %17 in 1 : vector<8x16xf32>, vector<8x16xf32>, vector<8x16xf32> -> vector<8x48xf32>
    %c0_10 = arith.constant 0 : index
    %c0_11 = arith.constant 0 : index
    %19 = vector.load %arg5[%c0_10, %c0_11] : memref<8x48xf32, #tpu.memory_space<vmem>>, vector<8x48xf32>
    tpu.vector_store %arg5[%c0_10, %c0_11], %18 {strides = array<i32>} : memref<8x48xf32, #tpu.memory_space<vmem>>, vector<8x48xf32>,
    return
  }
  func.func @transform_0(%arg0: i32) -> (i32, i32) {
    %c0_i32 = arith.constant 0 : i32
    %c0_i32_0 = arith.constant 0 : i32
    return %arg0, %c0_i32 : i32, i32
  }
  func.func @transform_1(%arg0: i32) -> (i32, i32) {
    %c0_i32 = arith.constant 0 : i32
    %c0_i32_0 = arith.constant 0 : i32
    %c0_i32_1 = arith.constant 0 : i32
    return %c0_i32, %c0_i32_0 : i32, i32
  }
  func.func @transform_2(%arg0: i32) -> (i32, i32) {
    %c0_i32 = arith.constant 0 : i32
    %c0_i32_0 = arith.constant 0 : i32
    %c0_i32_1 = arith.constant 0 : i32
    return %c0_i32, %c0_i32_0 : i32, i32
  }
  func.func @transform_3(%arg0: i32) -> (i32, i32) {
    %c0_i32 = arith.constant 0 : i32
    %c0_i32_0 = arith.constant 0 : i32
    return %arg0, %c0_i32 : i32, i32
  }
  func.func @transform_4(%arg0: i32) -> (i32, i32) {
    %c0_i32 = arith.constant 0 : i32
    %c0_i32_0 = arith.constant 0 : i32
    return %arg0, %c0_i32 : i32, i32
  }
}

</mosaic_0001>

<llo_original>
// kernel: tpu_custom_call.1
$region0: #{tpu_custom_call.1}
  #allocation0 [shape = 'u32[]', space=smem, size = 0x4, offset = 0x4, fixed_abs, tag = 'smem constant byte address 0x4 - core index']
  #allocation1 [shape = 'u32[144,128]{1,0:T(1,128)}', space=vmem, size = 0x12000, scoped, tag = 'internal scratch']
  %s0 = inlined_call_operand.hbm [shape: f32[8,32], index: 0, kind: input, shape index: {}]
  %s1 = inlined_call_operand.hbm [shape: f32[32,32], index: 1, kind: input, shape index: {}]
  %s2 = inlined_call_operand.vmem [shape: f32[1,32], index: 2, kind: input, shape index: {}]
  %s3 = inlined_call_operand.hbm [shape: f32[8,16], index: 3, kind: input, shape index: {}]
  %s4 = inlined_call_operand.hbm [shape: f32[8,48], index: 4, kind: output, shape index: {}]
  %s5 = sld [smem:[#allocation0]]
  $region38: #{tpu_custom_call.1} parent=0
    _
  %s7 = ssub.s32 1, %s5
  %s8 = scalar_select 0, %s7, %s5
  $region1: #{tpu_custom_call.1} parent=0
    #allocation2 [shape = 'u8[4096]{0}', space=vmem, size = 0x1000, scoped, tag = 'input window, operand 0, single buffered']
    #allocation3 [shape = 's32[1]{0}', space=sflag, size = 0x4, scoped, tag = 'scoped memory for tpu_custom_call.1']
    #allocation4 [shape = 's32[1]{0}', space=sflag, size = 0x4, scoped, tag = 'scoped memory for tpu_custom_call.1']
    #allocation5 [shape = 'u8[16384]{0}', space=vmem, size = 0x4000, scoped, tag = 'input window, operand 1, single buffered']
    #allocation6 [shape = 's32[1]{0}', space=sflag, size = 0x4, scoped, tag = 'scoped memory for tpu_custom_call.1']
    #allocation7 [shape = 'u8[4096]{0}', space=vmem, size = 0x1000, scoped, tag = 'input window, operand 3, single buffered']
    #allocation8 [shape = 'u8[4096]{0}', space=vmem, size = 0x1000, scoped, tag = 'output window, operand 0, single buffered']
    %9 = vsyncpa [#allocation3], 0
    %10 = vsyncpa [#allocation6], 0
    %11 = vsyncpa [#allocation4], 0
    // Predicated region
    $region2: #{tpu_custom_call.1} parent=1 // pred_check
      _
    $region3: #{tpu_custom_call.1} parent=1 // pred_check_branch
      %13 = sbr.rel (0) target = $region5
    $region4: #{tpu_custom_call.1} parent=1 // pred_region
      %s15 = ssub.s32 128, 128
      %16 = vsyncadd [#allocation3], %s15
      %s18 = sshll.u32 [#allocation2], 4
      %s19 = int_to_ptr.vmem [resolvable:$true] %s18
      %21 = dma.hbm_to_vmem [thread:$0]  %s0, 128, %s19, [#allocation3]
    $region5: #{tpu_custom_call.1} parent=1 // pred_fallthru
      _
    // Predicated region
    $region6: #{tpu_custom_call.1} parent=1 // pred_check
      _
    $region7: #{tpu_custom_call.1} parent=1 // pred_check_branch
      %23 = sbr.rel (0) target = $region9
    $region8: #{tpu_custom_call.1} parent=1 // pred_region
      %s25 = ssub.s32 512, 512
      %26 = vsyncadd [#allocation6], %s25
      %s27 = sshll.u32 [#allocation5], 4
      %s28 = int_to_ptr.vmem [resolvable:$true] %s27
      %33 = dma.hbm_to_vmem [thread:$0]  %s1, 512, %s28, [#allocation6], 128, 128, 8
    $region9: #{tpu_custom_call.1} parent=1 // pred_fallthru
      _
    // Predicated region
    $region10: #{tpu_custom_call.1} parent=1 // pred_check
      _
    $region11: #{tpu_custom_call.1} parent=1 // pred_check_branch
      %35 = sbr.rel (0) target = $region13
    $region12: #{tpu_custom_call.1} parent=1 // pred_region
      _
    $region13: #{tpu_custom_call.1} parent=1 // pred_fallthru
      _
    // Predicated region
    $region14: #{tpu_custom_call.1} parent=1 // pred_check
      _
    $region15: #{tpu_custom_call.1} parent=1 // pred_check_branch
      %37 = sbr.rel (0) target = $region17
    $region16: #{tpu_custom_call.1} parent=1 // pred_region
      %s39 = ssub.s32 128, 128
      %40 = vsyncadd [#allocation6], %s39
      %s42 = sshll.u32 [#allocation7], 4
      %s43 = int_to_ptr.vmem [resolvable:$true] %s42
      %45 = dma.hbm_to_vmem [thread:$0]  %s3, 128, %s43, [#allocation6]
    $region17: #{tpu_custom_call.1} parent=1 // pred_fallthru
      _
    // Predicated region
    $region18: #{tpu_custom_call.1} parent=1 // pred_check
      _
    $region19: #{tpu_custom_call.1} parent=1 // pred_check_branch
      %47 = sbr.rel (0) target = $region21
    $region20: #{tpu_custom_call.1} parent=1 // pred_region
      %48 = dma.done [#allocation3], 128
    $region21: #{tpu_custom_call.1} parent=1 // pred_fallthru
      _
    // Predicated region
    $region22: #{tpu_custom_call.1} parent=1 // pred_check
      _
    $region23: #{tpu_custom_call.1} parent=1 // pred_check_branch
      %50 = sbr.rel (0) target = $region25
    $region24: #{tpu_custom_call.1} parent=1 // pred_region
      %51 = dma.done [#allocation6], 512
    $region25: #{tpu_custom_call.1} parent=1 // pred_fallthru
      _
    // Predicated region
    $region26: #{tpu_custom_call.1} parent=1 // pred_check
      _
    $region27: #{tpu_custom_call.1} parent=1 // pred_check_branch
      %53 = sbr.rel (0) target = $region29
    $region28: #{tpu_custom_call.1} parent=1 // pred_region
      %54 = dma.done [#allocation6], 128
    $region29: #{tpu_custom_call.1} parent=1 // pred_fallthru
      _
    %v55 = vld [vmem:[#allocation2] sm:$0xff]
    %v56 = vld [vmem:[#allocation5] sm:$0xff]
    %v57 = vld [vmem:[#allocation5 + $0x8] sm:$0xff]
    %v58 = vld [vmem:[#allocation5 + $0x10] sm:$0xff]
    %v59 = vld [vmem:[#allocation5 + $0x18] sm:$0xff]
    %v60 = vld [vmem:[%s2] sm:$0x1]
    %v62 = vlaneseq
    %v63 = vshrl.u32 %v62, 7
    %v64 = vsub.s32 0, %v63
    %v65 = vrot.slane %v60, %v64
    %vm67 = vcmask 261120
    %v69 = vsel %vm67, %v55, 0
    %71 = vmatprep.subr.mxu0 0.0
    %72 = vmatpush1.msra.mxu0 0.0
    %73 = vmatprep.subr.mxu0 0.0
    %74 = vmatpush1.msra.mxu0 0.0
    %75 = vmatprep.subr.mxu0 0.0
    %76 = vmatpush1.msra.mxu0 0.0
    %77 = vmatprep.subr.mxu0 0.0
    %78 = vmatpush1.msra.mxu0 0.0
    %79 = vmatprep.subr.mxu0 0.0
    %80 = vmatpush1.msra.mxu0 0.0
    %81 = vmatprep.subr.mxu0 0.0
    %82 = vmatpush1.msra.mxu0 0.0
    %83 = vmatprep.subr.mxu0 0.0
    %84 = vmatpush1.msra.mxu0 0.0
    %85 = vmatprep.subr.mxu0 0.0
    %86 = vmatpush1.msra.mxu0 0.0
    %87 = vmatprep.subr.mxu0 0.0
    %88 = vmatpush1.msra.mxu0 0.0
    %89 = vmatprep.subr.mxu0 0.0
    %90 = vmatpush1.msra.mxu0 0.0
    %91 = vmatprep.subr.mxu0 0.0
    %92 = vmatpush1.msra.mxu0 0.0
    %93 = vmatprep.subr.mxu0 0.0
    %94 = vmatpush1.msra.mxu0 0.0
    %95 = vmatprep.subr.mxu0 0.0
    %96 = vmatpush1.msra.mxu0 %v59
    %97 = vmatprep.subr.mxu0 0.0
    %98 = vmatpush1.msra.mxu0 %v58
    %99 = vmatprep.subr.mxu0 0.0
    %100 = vmatpush1.msra.mxu0 %v57
    %101 = vmatprep.subr.mxu0 0.0
    %102 = vmatpush1.msra.mxu0 %v56
    %103 = vmatprep.subr.mxu0 0.0
    %104 = vmatpush2.msra.mxu0 0.0
    %105 = vmatprep.subr.mxu0 0.0
    %106 = vmatpush2.msra.mxu0 0.0
    %107 = vmatprep.subr.mxu0 0.0
    %108 = vmatpush2.msra.mxu0 0.0
    %109 = vmatprep.subr.mxu0 0.0
    %110 = vmatpush2.msra.mxu0 0.0
    %111 = vmatprep.subr.mxu0 0.0
    %112 = vmatpush2.msra.mxu0 0.0
    %113 = vmatprep.subr.mxu0 0.0
    %114 = vmatpush2.msra.mxu0 0.0
    %115 = vmatprep.subr.mxu0 0.0
    %116 = vmatpush2.msra.mxu0 0.0
    %117 = vmatprep.subr.mxu0 0.0
    %118 = vmatpush2.msra.mxu0 0.0
    %119 = vmatprep.subr.mxu0 0.0
    %120 = vmatpush2.msra.mxu0 0.0
    %121 = vmatprep.subr.mxu0 0.0
    %122 = vmatpush2.msra.mxu0 0.0
    %123 = vmatprep.subr.mxu0 0.0
    %124 = vmatpush2.msra.mxu0 0.0
    %125 = vmatprep.subr.mxu0 0.0
    %126 = vmatpush2.msra.mxu0 0.0
    %127 = vmatprep.subr.mxu0 0.0
    %128 = vmatpush2.msra.mxu0 0.0
    %129 = vmatprep.subr.mxu0 0.0
    %130 = vmatpush2.msra.mxu0 0.0
    %131 = vmatprep.subr.mxu0 0.0
    %132 = vmatpush2.msra.mxu0 0.0
    %133 = vmatprep.subr.mxu0 0.0
    %134 = vmatpush2.msra.mxu0 0.0
    %135 = vmatprep.mubr.f32.mxu0 0.0
    %136 = vmatmul.mubr.f32.gmra.mxu0 %v69
    %v137 = vpop.f32.mrf.mxu0
    %v138 = vadd.f32 %v65, %v137
    %v139 = vpop.f32.mrf.mxu0
    %140 = vdwg.mxu0
    %v141 = vmax.f32 %v138, -100.0
    %v142 = vmin.f32 %v141, 85.0
    %v143 = vmul.f32 %v142, 0.5
    %v144 = vmul.f32 %v143, 1.442695
    %v145 = vpow.pop %v144
    %v146 = vld [vmem:[#allocation7] sm:$0xff]
    %148 = vrot.lane.b32.xlu0 %v145, 112
    %v149 = vpop.permute.xlu0 %148
    %v151 = vmul.f32 %v146, %v149
    %v152 = vadd.f32 %v142, %v151
    %154 = vrot.lane.b32.xlu0 %v152, 32
    %v155 = vpop.permute.xlu0 %154
    %v157 = vsel %vm67, %v142, %v155
    %vm158 = vcmask 392192
    %159 = vst.msk [vmem:[#allocation8] sm:$0xff] %vm158, %v157
    // Predicated region
    $region30: #{tpu_custom_call.1} parent=1 // pred_check
      _
    $region31: #{tpu_custom_call.1} parent=1 // pred_check_branch
      %161 = sbr.rel (0) target = $region33
    $region32: #{tpu_custom_call.1} parent=1 // pred_region
      %s163 = ssub.s32 128, 128
      %164 = vsyncadd [#allocation4], %s163
      %s166 = sshll.u32 [#allocation8], 4
      %s167 = int_to_ptr.vmem [resolvable:$true] %s166
      %169 = dma.vmem_to_hbm [thread:$0]  %s167, 128, %s4, [#allocation4]
    $region33: #{tpu_custom_call.1} parent=1 // pred_fallthru
      _
    // Predicated region
    $region34: #{tpu_custom_call.1} parent=1 // pred_check
      _
    $region35: #{tpu_custom_call.1} parent=1 // pred_check_branch
      %171 = sbr.rel (0) target = $region37
    $region36: #{tpu_custom_call.1} parent=1 // pred_region
      %172 = dma.done [#allocation4], 128
    $region37: #{tpu_custom_call.1} parent=1 // pred_fallthru
      _
    %173 = vsyncpa [#allocation3], 1
    %174 = vsyncpa [#allocation6], 1
    %175 = vsyncpa [#allocation4], 1

</llo_original>
